<compile_context>
chip_gen: v6e
topology: v6e:2x2x1
jax: 0.10.0
libtpu: 0.0.40
codegen_flags: <defaults>
</compile_context>

<pallas_src>
import jax
import jax.numpy as jnp
from jax import lax
from jax.experimental import pallas as pl
from jax.experimental.pallas import tpu as pltpu

INPUT_DIM = 7
HIDDEN_DIM = 32
OUTPUT_DIM = 1


def lstm_kernel(x_ref, wih_ref, whh_ref, b_ref, h_out_ref, gates_x):
    """Sequential LSTM recurrence; returns every hidden state.

    x_ref:     (T, INPUT_DIM)   f32
    wih_ref:   (INPUT_DIM, 4H)  f32   (W_ih transposed, gate cols = i,f,o,g)
    whh_ref:   (H, 4H)          bf16  (W_hh transposed, gate cols = i,f,o,g)
    b_ref:     (1, 4H)          f32   (b_ih + b_hh,     gate cols = i,f,o,g)
    h_out_ref: (T, H)           f32   output: all hidden states
    gates_x:   (T, 4H)          f32   VMEM scratch for the hoisted input proj.
    """
    T = x_ref.shape[0]
    H = whh_ref.shape[0]

    # Hoisted input projection: one batched (T, IN) @ (IN, 4H) f32 matmul
    # plus a single broadcast bias add; off the serial critical path.
    gates_x[...] = (
        jnp.dot(x_ref[...], wih_ref[...], preferred_element_type=jnp.float32)
        + b_ref[...]
    )

    # Hoist the recurrent weight load (bf16 -> single MXU pass per step).
    whh = whh_ref[...]

    # Per-lane constants for the fused activation, hoisted out of the loop
    # (JAX does not CSE broadcast_in_dim):
    #   lanes [0, 3H):  sigmoid(x) = 0.5 * tanh(0.5*x) + 0.5
    #   lanes [3H, 4H): tanh(x)
    scale = jnp.concatenate(
        [jnp.full((1, 3 * H), 0.5, jnp.float32),
         jnp.ones((1, H), jnp.float32)], axis=1)          # also the post-gain
    shift = jnp.concatenate(
        [jnp.full((1, 3 * H), 0.5, jnp.float32),
         jnp.zeros((1, H), jnp.float32)], axis=1)

    def step(t, carry):
        h, c = carry                                          # (1, H), (1, H)
        gates = gates_x[pl.ds(t, 1), :] + jnp.dot(
            h.astype(jnp.bfloat16), whh,
            preferred_element_type=jnp.float32)               # (1, 4H) f32
        # Single EUP tanh over the whole (1, 4H) vreg; the extra mul/FMA ride
        # in otherwise-free VALU slots.
        act = jnp.tanh(gates * scale) * scale + shift
        i = act[:, 0:H]
        f = act[:, H:2 * H]
        o = act[:, 2 * H:3 * H]
        g = act[:, 3 * H:4 * H]
        c_new = f * c + i * g
        h_new = o * jnp.tanh(c_new)
        h_out_ref[pl.ds(t, 1), :] = h_new
        return (h_new, c_new)

    h0 = jnp.zeros((1, H), jnp.float32)
    c0 = jnp.zeros((1, H), jnp.float32)
    # Fully unrolled: T is static and small, giving the scheduler
    # cross-iteration visibility over the serial dependency chain.
    # (Switch to unroll=4..8 if T grows beyond a few dozen steps.)
    lax.fori_loop(0, T, step, (h0, c0), unroll=True)


def _reorder_gates(w):
    """Permute the last (4H) axis from PyTorch (i, f, g, o) to (i, f, o, g)."""
    i, f, g, o = jnp.split(w, 4, axis=-1)
    return jnp.concatenate([i, f, o, g], axis=-1)


def prepare_params(params):
    """One-time weight plumbing: transpose, gate reorder, bias fuse, casts."""
    w_ih, w_hh, b_ih, b_hh, w_lin, b_lin = params
    H = HIDDEN_DIM
    bias = (b_ih + b_hh).reshape(1, 4 * H)
    wih_t = _reorder_gates(w_ih.T.astype(jnp.float32))                  # (IN, 4H) f32
    whh_t = _reorder_gates(w_hh.T.astype(jnp.float32)).astype(jnp.bfloat16)  # (H, 4H) bf16
    bias_r = _reorder_gates(bias.astype(jnp.float32))                   # (1, 4H) f32
    w_lin_t = w_lin.T.astype(jnp.float32)                               # (H, 1)
    b_lin_f = b_lin.astype(jnp.float32)                                 # (1,)
    return (wih_t, whh_t, bias_r, w_lin_t, b_lin_f)


@jax.jit
def lstm_forward(x, prepared):
    """x: (T, INPUT_DIM) float32 -> (T,) float32 (matches module's .squeeze())."""
    wih_t, whh_t, bias_r, w_lin_t, b_lin_f = prepared
    T = x.shape[0]
    H = HIDDEN_DIM

    h_all = pl.pallas_call(
        lstm_kernel,
        out_shape=jax.ShapeDtypeStruct((T, H), jnp.float32),
        in_specs=[pl.BlockSpec(memory_space=pltpu.MemorySpace.VMEM)] * 4,
        out_specs=pl.BlockSpec(memory_space=pltpu.MemorySpace.VMEM),
        scratch_shapes=[pltpu.VMEM((T, 4 * H), jnp.float32)],
    )(x.astype(jnp.float32), wih_t, whh_t, bias_r)

    # Final (T,32)@(32,1)+b projection stays in plain JAX (fused under this
    # jit): doing it in-kernel would force a lane-sparse (last-dim=1) output
    # -> masked partial stores and an N=1 MXU matmul, for zero benefit.
    out = h_all @ w_lin_t + b_lin_f
    return out.squeeze(-1)


def init_params(key):
    """Deterministic init matching PyTorch's default U(-1/sqrt(H), 1/sqrt(H))."""
    k = 1.0 / jnp.sqrt(jnp.float32(HIDDEN_DIM))
    keys = jax.random.split(key, 6)
    w_ih = jax.random.uniform(keys[0], (4 * HIDDEN_DIM, INPUT_DIM),
                              jnp.float32, -k, k)
    w_hh = jax.random.uniform(keys[1], (4 * HIDDEN_DIM, HIDDEN_DIM),
                              jnp.float32, -k, k)
    b_ih = jax.random.uniform(keys[2], (4 * HIDDEN_DIM,), jnp.float32, -k, k)
    b_hh = jax.random.uniform(keys[3], (4 * HIDDEN_DIM,), jnp.float32, -k, k)
    w_lin = jax.random.uniform(keys[4], (OUTPUT_DIM, HIDDEN_DIM),
                               jnp.float32, -k, k)
    b_lin = jax.random.uniform(keys[5], (OUTPUT_DIM,), jnp.float32, -k, k)
    return (w_ih, w_hh, b_ih, b_hh, w_lin, b_lin)


def lstm_forward_ref(x, params):
    """Pure-JAX f32 reference in original PyTorch (i, f, g, o) gate order."""
    w_ih, w_hh, b_ih, b_hh, w_lin, b_lin = params
    H = HIDDEN_DIM

    def step(carry, x_t):
        h, c = carry
        gates = x_t @ w_ih.T + h @ w_hh.T + b_ih + b_hh
        i = jax.nn.sigmoid(gates[0:H])
        f = jax.nn.sigmoid(gates[H:2 * H])
        g = jnp.tanh(gates[2 * H:3 * H])
        o = jax.nn.sigmoid(gates[3 * H:4 * H])
        c = f * c + i * g
        h = o * jnp.tanh(c)
        return (h, c), h

    init = (jnp.zeros((H,), jnp.float32), jnp.zeros((H,), jnp.float32))
    _, hs = lax.scan(step, init, x.astype(jnp.float32))
    return (hs @ w_lin.T + b_lin).squeeze(-1)


if __name__ == "__main__":
    T = 8
    key = jax.random.PRNGKey(0)
    k_x, k_p = jax.random.split(key)
    x = jax.random.normal(k_x, (T, INPUT_DIM), jnp.float32)
    params = init_params(k_p)

    prepared = prepare_params(params)
    out = jax.block_until_ready(lstm_forward(x, prepared))
    ref = jax.block_until_ready(lstm_forward_ref(x, params))

    assert out.shape == (T,), out.shape
    # Tolerance relaxed vs. the f32-only version: the recurrent matmul now
    # runs with bf16 operands (f32 accumulation).
    assert jnp.allclose(out, ref, atol=1e-2, rtol=1e-2), (out, ref)
    print("KERNEL_OK")
</pallas_src>

<mosaic_0001>
module attributes {stable_mosaic.version = 11 : i64} {
  func.func @lstm_kernel(%arg0: memref<8x7xf32, #tpu.memory_space<vmem>>, %arg1: memref<7x128xf32, #tpu.memory_space<vmem>>, %arg2: memref<32x128xbf16, #tpu.memory_space<vmem>>, %arg3: memref<1x128xf32, #tpu.memory_space<vmem>>, %arg4: memref<8x32xf32, #tpu.memory_space<vmem>>, %arg5: memref<8x128xf32, #tpu.memory_space<vmem>>) attributes {dimension_semantics = [], scalar_prefetch = 0 : i64, scratch_operands = 1 : i64, tpu.core_type = #tpu.core_type<tc>} {
    %c0 = arith.constant 0 : index
    %c0_0 = arith.constant 0 : index
    %0 = vector.load %arg0[%c0, %c0_0] : memref<8x7xf32, #tpu.memory_space<vmem>>, vector<8x7xf32>
    %c0_1 = arith.constant 0 : index
    %c0_2 = arith.constant 0 : index
    %1 = vector.load %arg1[%c0_1, %c0_2] : memref<7x128xf32, #tpu.memory_space<vmem>>, vector<7x128xf32>
    %cst = arith.constant dense<0.000000e+00> : vector<8x128xf32>
    %2 = tpu.matmul %0, %1, %cst {dimension_numbers = #tpu.dot_dimension_numbers<[1], [0], [0], [1], [0, 0, 1, 1], [], []>} : vector<8x7xf32>, vector<7x128xf32>, vector<8x128xf32> -> vector<8x128xf32>
    %c0_3 = arith.constant 0 : index
    %c0_4 = arith.constant 0 : index
    %3 = vector.load %arg3[%c0_3, %c0_4] : memref<1x128xf32, #tpu.memory_space<vmem>>, vector<1x128xf32>
    %4 = vector.broadcast %3 : vector<1x128xf32> to vector<8x128xf32>
    %5 = arith.addf %2, %4 : vector<8x128xf32>
    %c0_5 = arith.constant 0 : index
    %c0_6 = arith.constant 0 : index
    %6 = vector.load %arg5[%c0_5, %c0_6] : memref<8x128xf32, #tpu.memory_space<vmem>>, vector<8x128xf32>
    tpu.vector_store %arg5[%c0_5, %c0_6], %5 {strides = array<i32>} : memref<8x128xf32, #tpu.memory_space<vmem>>, vector<8x128xf32>,
    %c0_7 = arith.constant 0 : index
    %c0_8 = arith.constant 0 : index
    %7 = vector.load %arg2[%c0_7, %c0_8] : memref<32x128xbf16, #tpu.memory_space<vmem>>, vector<32x128xbf16>
    %cst_9 = arith.constant 5.000000e-01 : f32
    %8 = vector.broadcast %cst_9 : f32 to vector<1x96xf32>
    %cst_10 = arith.constant 1.000000e+00 : f32
    %9 = vector.broadcast %cst_10 : f32 to vector<1x32xf32>
    %10 = tpu.concatenate %8, %9 in 1 : vector<1x96xf32>, vector<1x32xf32> -> vector<1x128xf32>
    %cst_11 = arith.constant 5.000000e-01 : f32
    %11 = vector.broadcast %cst_11 : f32 to vector<1x96xf32>
    %cst_12 = arith.constant 0.000000e+00 : f32
    %12 = vector.broadcast %cst_12 : f32 to vector<1x32xf32>
    %13 = tpu.concatenate %11, %12 in 1 : vector<1x96xf32>, vector<1x32xf32> -> vector<1x128xf32>
    %cst_13 = arith.constant 0.000000e+00 : f32
    %14 = vector.broadcast %cst_13 : f32 to vector<1x32xf32>
    %cst_14 = arith.constant 0.000000e+00 : f32
    %15 = vector.broadcast %cst_14 : f32 to vector<1x32xf32>
    %c0_i32 = arith.constant 0 : i32
    %16 = arith.index_cast %c0_i32 : i32 to index
    %c0_15 = arith.constant 0 : index
    %17 = vector.load %arg5[%16, %c0_15] : memref<8x128xf32, #tpu.memory_space<vmem>>, vector<1x128xf32>
    %18 = arith.truncf %14 : vector<1x32xf32> to vector<1x32xbf16>
    %cst_16 = arith.constant dense<0.000000e+00> : vector<1x128xf32>
    %19 = tpu.matmul %18, %7, %cst_16 {dimension_numbers = #tpu.dot_dimension_numbers<[1], [0], [0], [1], [0, 0, 1, 1], [], []>} : vector<1x32xbf16>, vector<32x128xbf16>, vector<1x128xf32> -> vector<1x128xf32>
    %20 = arith.addf %17, %19 : vector<1x128xf32>
    %21 = arith.mulf %20, %10 : vector<1x128xf32>
    %22 = math.tanh %21 : vector<1x128xf32>
    %23 = arith.mulf %22, %10 : vector<1x128xf32>
    %24 = arith.addf %23, %13 : vector<1x128xf32>
    %25 = vector.extract_strided_slice %24 {offsets = [0, 0], sizes = [1, 32], strides = [1, 1]} : vector<1x128xf32> to vector<1x32xf32>
    %26 = vector.extract_strided_slice %24 {offsets = [0, 32], sizes = [1, 32], strides = [1, 1]} : vector<1x128xf32> to vector<1x32xf32>
    %27 = vector.extract_strided_slice %24 {offsets = [0, 64], sizes = [1, 32], strides = [1, 1]} : vector<1x128xf32> to vector<1x32xf32>
    %28 = vector.extract_strided_slice %24 {offsets = [0, 96], sizes = [1, 32], strides = [1, 1]} : vector<1x128xf32> to vector<1x32xf32>
    %29 = arith.mulf %26, %15 : vector<1x32xf32>
    %30 = arith.mulf %25, %28 : vector<1x32xf32>
    %31 = arith.addf %29, %30 : vector<1x32xf32>
    %32 = math.tanh %31 : vector<1x32xf32>
    %33 = arith.mulf %27, %32 : vector<1x32xf32>
    %34 = arith.index_cast %c0_i32 : i32 to index
    %c0_17 = arith.constant 0 : index
    %35 = vector.load %arg4[%34, %c0_17] : memref<8x32xf32, #tpu.memory_space<vmem>>, vector<1x32xf32>
    tpu.vector_store %arg4[%34, %c0_17], %33 {strides = array<i32>} : memref<8x32xf32, #tpu.memory_space<vmem>>, vector<1x32xf32>,
    %c1_i32 = arith.constant 1 : i32
    %36 = arith.index_cast %c1_i32 : i32 to index
    %c0_18 = arith.constant 0 : index
    %37 = vector.load %arg5[%36, %c0_18] : memref<8x128xf32, #tpu.memory_space<vmem>>, vector<1x128xf32>
    %38 = arith.truncf %33 : vector<1x32xf32> to vector<1x32xbf16>
    %cst_19 = arith.constant dense<0.000000e+00> : vector<1x128xf32>
    %39 = tpu.matmul %38, %7, %cst_19 {dimension_numbers = #tpu.dot_dimension_numbers<[1], [0], [0], [1], [0, 0, 1, 1], [], []>} : vector<1x32xbf16>, vector<32x128xbf16>, vector<1x128xf32> -> vector<1x128xf32>
    %40 = arith.addf %37, %39 : vector<1x128xf32>
    %41 = arith.mulf %40, %10 : vector<1x128xf32>
    %42 = math.tanh %41 : vector<1x128xf32>
    %43 = arith.mulf %42, %10 : vector<1x128xf32>
    %44 = arith.addf %43, %13 : vector<1x128xf32>
    %45 = vector.extract_strided_slice %44 {offsets = [0, 0], sizes = [1, 32], strides = [1, 1]} : vector<1x128xf32> to vector<1x32xf32>
    %46 = vector.extract_strided_slice %44 {offsets = [0, 32], sizes = [1, 32], strides = [1, 1]} : vector<1x128xf32> to vector<1x32xf32>
    %47 = vector.extract_strided_slice %44 {offsets = [0, 64], sizes = [1, 32], strides = [1, 1]} : vector<1x128xf32> to vector<1x32xf32>
    %48 = vector.extract_strided_slice %44 {offsets = [0, 96], sizes = [1, 32], strides = [1, 1]} : vector<1x128xf32> to vector<1x32xf32>
    %49 = arith.mulf %46, %31 : vector<1x32xf32>
    %50 = arith.mulf %45, %48 : vector<1x32xf32>
    %51 = arith.addf %49, %50 : vector<1x32xf32>
    %52 = math.tanh %51 : vector<1x32xf32>
    %53 = arith.mulf %47, %52 : vector<1x32xf32>
    %54 = arith.index_cast %c1_i32 : i32 to index
    %c0_20 = arith.constant 0 : index
    %55 = vector.load %arg4[%54, %c0_20] : memref<8x32xf32, #tpu.memory_space<vmem>>, vector<1x32xf32>
    tpu.vector_store %arg4[%54, %c0_20], %53 {strides = array<i32>} : memref<8x32xf32, #tpu.memory_space<vmem>>, vector<1x32xf32>,
    %c2_i32 = arith.constant 2 : i32
    %56 = arith.index_cast %c2_i32 : i32 to index
    %c0_21 = arith.constant 0 : index
    %57 = vector.load %arg5[%56, %c0_21] : memref<8x128xf32, #tpu.memory_space<vmem>>, vector<1x128xf32>
    %58 = arith.truncf %53 : vector<1x32xf32> to vector<1x32xbf16>
    %cst_22 = arith.constant dense<0.000000e+00> : vector<1x128xf32>
    %59 = tpu.matmul %58, %7, %cst_22 {dimension_numbers = #tpu.dot_dimension_numbers<[1], [0], [0], [1], [0, 0, 1, 1], [], []>} : vector<1x32xbf16>, vector<32x128xbf16>, vector<1x128xf32> -> vector<1x128xf32>
    %60 = arith.addf %57, %59 : vector<1x128xf32>
    %61 = arith.mulf %60, %10 : vector<1x128xf32>
    %62 = math.tanh %61 : vector<1x128xf32>
    %63 = arith.mulf %62, %10 : vector<1x128xf32>
    %64 = arith.addf %63, %13 : vector<1x128xf32>
    %65 = vector.extract_strided_slice %64 {offsets = [0, 0], sizes = [1, 32], strides = [1, 1]} : vector<1x128xf32> to vector<1x32xf32>
    %66 = vector.extract_strided_slice %64 {offsets = [0, 32], sizes = [1, 32], strides = [1, 1]} : vector<1x128xf32> to vector<1x32xf32>
    %67 = vector.extract_strided_slice %64 {offsets = [0, 64], sizes = [1, 32], strides = [1, 1]} : vector<1x128xf32> to vector<1x32xf32>
    %68 = vector.extract_strided_slice %64 {offsets = [0, 96], sizes = [1, 32], strides = [1, 1]} : vector<1x128xf32> to vector<1x32xf32>
    %69 = arith.mulf %66, %51 : vector<1x32xf32>
    %70 = arith.mulf %65, %68 : vector<1x32xf32>
    %71 = arith.addf %69, %70 : vector<1x32xf32>
    %72 = math.tanh %71 : vector<1x32xf32>
    %73 = arith.mulf %67, %72 : vector<1x32xf32>
    %74 = arith.index_cast %c2_i32 : i32 to index
    %c0_23 = arith.constant 0 : index
    %75 = vector.load %arg4[%74, %c0_23] : memref<8x32xf32, #tpu.memory_space<vmem>>, vector<1x32xf32>
    tpu.vector_store %arg4[%74, %c0_23], %73 {strides = array<i32>} : memref<8x32xf32, #tpu.memory_space<vmem>>, vector<1x32xf32>,
    %c3_i32 = arith.constant 3 : i32
    %76 = arith.index_cast %c3_i32 : i32 to index
    %c0_24 = arith.constant 0 : index
    %77 = vector.load %arg5[%76, %c0_24] : memref<8x128xf32, #tpu.memory_space<vmem>>, vector<1x128xf32>
    %78 = arith.truncf %73 : vector<1x32xf32> to vector<1x32xbf16>
    %cst_25 = arith.constant dense<0.000000e+00> : vector<1x128xf32>
    %79 = tpu.matmul %78, %7, %cst_25 {dimension_numbers = #tpu.dot_dimension_numbers<[1], [0], [0], [1], [0, 0, 1, 1], [], []>} : vector<1x32xbf16>, vector<32x128xbf16>, vector<1x128xf32> -> vector<1x128xf32>
    %80 = arith.addf %77, %79 : vector<1x128xf32>
    %81 = arith.mulf %80, %10 : vector<1x128xf32>
    %82 = math.tanh %81 : vector<1x128xf32>
    %83 = arith.mulf %82, %10 : vector<1x128xf32>
    %84 = arith.addf %83, %13 : vector<1x128xf32>
    %85 = vector.extract_strided_slice %84 {offsets = [0, 0], sizes = [1, 32], strides = [1, 1]} : vector<1x128xf32> to vector<1x32xf32>
    %86 = vector.extract_strided_slice %84 {offsets = [0, 32], sizes = [1, 32], strides = [1, 1]} : vector<1x128xf32> to vector<1x32xf32>
    %87 = vector.extract_strided_slice %84 {offsets = [0, 64], sizes = [1, 32], strides = [1, 1]} : vector<1x128xf32> to vector<1x32xf32>
    %88 = vector.extract_strided_slice %84 {offsets = [0, 96], sizes = [1, 32], strides = [1, 1]} : vector<1x128xf32> to vector<1x32xf32>
    %89 = arith.mulf %86, %71 : vector<1x32xf32>
    %90 = arith.mulf %85, %88 : vector<1x32xf32>
    %91 = arith.addf %89, %90 : vector<1x32xf32>
    %92 = math.tanh %91 : vector<1x32xf32>
    %93 = arith.mulf %87, %92 : vector<1x32xf32>
    %94 = arith.index_cast %c3_i32 : i32 to index
    %c0_26 = arith.constant 0 : index
    %95 = vector.load %arg4[%94, %c0_26] : memref<8x32xf32, #tpu.memory_space<vmem>>, vector<1x32xf32>
    tpu.vector_store %arg4[%94, %c0_26], %93 {strides = array<i32>} : memref<8x32xf32, #tpu.memory_space<vmem>>, vector<1x32xf32>,
    %c4_i32 = arith.constant 4 : i32
    %96 = arith.index_cast %c4_i32 : i32 to index
    %c0_27 = arith.constant 0 : index
    %97 = vector.load %arg5[%96, %c0_27] : memref<8x128xf32, #tpu.memory_space<vmem>>, vector<1x128xf32>
    %98 = arith.truncf %93 : vector<1x32xf32> to vector<1x32xbf16>
    %cst_28 = arith.constant dense<0.000000e+00> : vector<1x128xf32>
    %99 = tpu.matmul %98, %7, %cst_28 {dimension_numbers = #tpu.dot_dimension_numbers<[1], [0], [0], [1], [0, 0, 1, 1], [], []>} : vector<1x32xbf16>, vector<32x128xbf16>, vector<1x128xf32> -> vector<1x128xf32>
    %100 = arith.addf %97, %99 : vector<1x128xf32>
    %101 = arith.mulf %100, %10 : vector<1x128xf32>
    %102 = math.tanh %101 : vector<1x128xf32>
    %103 = arith.mulf %102, %10 : vector<1x128xf32>
    %104 = arith.addf %103, %13 : vector<1x128xf32>
    %105 = vector.extract_strided_slice %104 {offsets = [0, 0], sizes = [1, 32], strides = [1, 1]} : vector<1x128xf32> to vector<1x32xf32>
    %106 = vector.extract_strided_slice %104 {offsets = [0, 32], sizes = [1, 32], strides = [1, 1]} : vector<1x128xf32> to vector<1x32xf32>
    %107 = vector.extract_strided_slice %104 {offsets = [0, 64], sizes = [1, 32], strides = [1, 1]} : vector<1x128xf32> to vector<1x32xf32>
    %108 = vector.extract_strided_slice %104 {offsets = [0, 96], sizes = [1, 32], strides = [1, 1]} : vector<1x128xf32> to vector<1x32xf32>
    %109 = arith.mulf %106, %91 : vector<1x32xf32>
    %110 = arith.mulf %105, %108 : vector<1x32xf32>
    %111 = arith.addf %109, %110 : vector<1x32xf32>
    %112 = math.tanh %111 : vector<1x32xf32>
    %113 = arith.mulf %107, %112 : vector<1x32xf32>
    %114 = arith.index_cast %c4_i32 : i32 to index
    %c0_29 = arith.constant 0 : index
    %115 = vector.load %arg4[%114, %c0_29] : memref<8x32xf32, #tpu.memory_space<vmem>>, vector<1x32xf32>
    tpu.vector_store %arg4[%114, %c0_29], %113 {strides = array<i32>} : memref<8x32xf32, #tpu.memory_space<vmem>>, vector<1x32xf32>,
    %c5_i32 = arith.constant 5 : i32
    %116 = arith.index_cast %c5_i32 : i32 to index
    %c0_30 = arith.constant 0 : index
    %117 = vector.load %arg5[%116, %c0_30] : memref<8x128xf32, #tpu.memory_space<vmem>>, vector<1x128xf32>
    %118 = arith.truncf %113 : vector<1x32xf32> to vector<1x32xbf16>
    %cst_31 = arith.constant dense<0.000000e+00> : vector<1x128xf32>
    %119 = tpu.matmul %118, %7, %cst_31 {dimension_numbers = #tpu.dot_dimension_numbers<[1], [0], [0], [1], [0, 0, 1, 1], [], []>} : vector<1x32xbf16>, vector<32x128xbf16>, vector<1x128xf32> -> vector<1x128xf32>
    %120 = arith.addf %117, %119 : vector<1x128xf32>
    %121 = arith.mulf %120, %10 : vector<1x128xf32>
    %122 = math.tanh %121 : vector<1x128xf32>
    %123 = arith.mulf %122, %10 : vector<1x128xf32>
    %124 = arith.addf %123, %13 : vector<1x128xf32>
    %125 = vector.extract_strided_slice %124 {offsets = [0, 0], sizes = [1, 32], strides = [1, 1]} : vector<1x128xf32> to vector<1x32xf32>
    %126 = vector.extract_strided_slice %124 {offsets = [0, 32], sizes = [1, 32], strides = [1, 1]} : vector<1x128xf32> to vector<1x32xf32>
    %127 = vector.extract_strided_slice %124 {offsets = [0, 64], sizes = [1, 32], strides = [1, 1]} : vector<1x128xf32> to vector<1x32xf32>
    %128 = vector.extract_strided_slice %124 {offsets = [0, 96], sizes = [1, 32], strides = [1, 1]} : vector<1x128xf32> to vector<1x32xf32>
    %129 = arith.mulf %126, %111 : vector<1x32xf32>
    %130 = arith.mulf %125, %128 : vector<1x32xf32>
    %131 = arith.addf %129, %130 : vector<1x32xf32>
    %132 = math.tanh %131 : vector<1x32xf32>
    %133 = arith.mulf %127, %132 : vector<1x32xf32>
    %134 = arith.index_cast %c5_i32 : i32 to index
    %c0_32 = arith.constant 0 : index
    %135 = vector.load %arg4[%134, %c0_32] : memref<8x32xf32, #tpu.memory_space<vmem>>, vector<1x32xf32>
    tpu.vector_store %arg4[%134, %c0_32], %133 {strides = array<i32>} : memref<8x32xf32, #tpu.memory_space<vmem>>, vector<1x32xf32>,
    %c6_i32 = arith.constant 6 : i32
    %136 = arith.index_cast %c6_i32 : i32 to index
    %c0_33 = arith.constant 0 : index
    %137 = vector.load %arg5[%136, %c0_33] : memref<8x128xf32, #tpu.memory_space<vmem>>, vector<1x128xf32>
    %138 = arith.truncf %133 : vector<1x32xf32> to vector<1x32xbf16>
    %cst_34 = arith.constant dense<0.000000e+00> : vector<1x128xf32>
    %139 = tpu.matmul %138, %7, %cst_34 {dimension_numbers = #tpu.dot_dimension_numbers<[1], [0], [0], [1], [0, 0, 1, 1], [], []>} : vector<1x32xbf16>, vector<32x128xbf16>, vector<1x128xf32> -> vector<1x128xf32>
    %140 = arith.addf %137, %139 : vector<1x128xf32>
    %141 = arith.mulf %140, %10 : vector<1x128xf32>
    %142 = math.tanh %141 : vector<1x128xf32>
    %143 = arith.mulf %142, %10 : vector<1x128xf32>
    %144 = arith.addf %143, %13 : vector<1x128xf32>
    %145 = vector.extract_strided_slice %144 {offsets = [0, 0], sizes = [1, 32], strides = [1, 1]} : vector<1x128xf32> to vector<1x32xf32>
    %146 = vector.extract_strided_slice %144 {offsets = [0, 32], sizes = [1, 32], strides = [1, 1]} : vector<1x128xf32> to vector<1x32xf32>
    %147 = vector.extract_strided_slice %144 {offsets = [0, 64], sizes = [1, 32], strides = [1, 1]} : vector<1x128xf32> to vector<1x32xf32>
    %148 = vector.extract_strided_slice %144 {offsets = [0, 96], sizes = [1, 32], strides = [1, 1]} : vector<1x128xf32> to vector<1x32xf32>
    %149 = arith.mulf %146, %131 : vector<1x32xf32>
    %150 = arith.mulf %145, %148 : vector<1x32xf32>
    %151 = arith.addf %149, %150 : vector<1x32xf32>
    %152 = math.tanh %151 : vector<1x32xf32>
    %153 = arith.mulf %147, %152 : vector<1x32xf32>
    %154 = arith.index_cast %c6_i32 : i32 to index
    %c0_35 = arith.constant 0 : index
    %155 = vector.load %arg4[%154, %c0_35] : memref<8x32xf32, #tpu.memory_space<vmem>>, vector<1x32xf32>
    tpu.vector_store %arg4[%154, %c0_35], %153 {strides = array<i32>} : memref<8x32xf32, #tpu.memory_space<vmem>>, vector<1x32xf32>,
    %c7_i32 = arith.constant 7 : i32
    %156 = arith.index_cast %c7_i32 : i32 to index
    %c0_36 = arith.constant 0 : index
    %157 = vector.load %arg5[%156, %c0_36] : memref<8x128xf32, #tpu.memory_space<vmem>>, vector<1x128xf32>
    %158 = arith.truncf %153 : vector<1x32xf32> to vector<1x32xbf16>
    %cst_37 = arith.constant dense<0.000000e+00> : vector<1x128xf32>
    %159 = tpu.matmul %158, %7, %cst_37 {dimension_numbers = #tpu.dot_dimension_numbers<[1], [0], [0], [1], [0, 0, 1, 1], [], []>} : vector<1x32xbf16>, vector<32x128xbf16>, vector<1x128xf32> -> vector<1x128xf32>
    %160 = arith.addf %157, %159 : vector<1x128xf32>
    %161 = arith.mulf %160, %10 : vector<1x128xf32>
    %162 = math.tanh %161 : vector<1x128xf32>
    %163 = arith.mulf %162, %10 : vector<1x128xf32>
    %164 = arith.addf %163, %13 : vector<1x128xf32>
    %165 = vector.extract_strided_slice %164 {offsets = [0, 0], sizes = [1, 32], strides = [1, 1]} : vector<1x128xf32> to vector<1x32xf32>
    %166 = vector.extract_strided_slice %164 {offsets = [0, 32], sizes = [1, 32], strides = [1, 1]} : vector<1x128xf32> to vector<1x32xf32>
    %167 = vector.extract_strided_slice %164 {offsets = [0, 64], sizes = [1, 32], strides = [1, 1]} : vector<1x128xf32> to vector<1x32xf32>
    %168 = vector.extract_strided_slice %164 {offsets = [0, 96], sizes = [1, 32], strides = [1, 1]} : vector<1x128xf32> to vector<1x32xf32>
    %169 = arith.mulf %166, %151 : vector<1x32xf32>
    %170 = arith.mulf %165, %168 : vector<1x32xf32>
    %171 = arith.addf %169, %170 : vector<1x32xf32>
    %172 = math.tanh %171 : vector<1x32xf32>
    %173 = arith.mulf %167, %172 : vector<1x32xf32>
    %174 = arith.index_cast %c7_i32 : i32 to index
    %c0_38 = arith.constant 0 : index
    %175 = vector.load %arg4[%174, %c0_38] : memref<8x32xf32, #tpu.memory_space<vmem>>, vector<1x32xf32>
    tpu.vector_store %arg4[%174, %c0_38], %173 {strides = array<i32>} : memref<8x32xf32, #tpu.memory_space<vmem>>, vector<1x32xf32>,
    %c8_i32 = arith.constant 8 : i32
    return
  }
}

</mosaic_0001>

<llo_original>
// kernel: lstm_forward.1
$region0: #{lstm_forward.1}
  #allocation0 [shape = 'u32[]', space=smem, size = 0x4, offset = 0x4, fixed_abs, tag = 'smem constant byte address 0x4 - core index']
  #allocation1 [shape = 'u32[144,128]{1,0:T(1,128)}', space=vmem, size = 0x12000, scoped, tag = 'internal scratch']
  #allocation2 [shape = 'f32[8,128]{1,0:T(8,128)}', space=vmem, size = 0x1000, scoped, tag = 'scratch operand']
  %s0 = inlined_call_operand.hbm [shape: f32[8,7], index: 0, kind: input, shape index: {}]
  %s1 = inlined_call_operand.hbm [shape: f32[7,128], index: 1, kind: input, shape index: {}]
  %s2 = inlined_call_operand.hbm [shape: bf16[32,128], index: 2, kind: input, shape index: {}]
  %s3 = inlined_call_operand.vmem [shape: f32[1,128], index: 3, kind: input, shape index: {}]
  %s4 = inlined_call_operand.vmem [shape: f32[8,32], index: 4, kind: output, shape index: {}]
  %s5 = sld [smem:[#allocation0]]
  $region38: #{lstm_forward.1} parent=0
    _
  %s7 = ssub.s32 1, %s5
  %s8 = scalar_select 0, %s7, %s5
  $region1: #{lstm_forward.1} parent=0
    #allocation3 [shape = 'u8[4096]{0}', space=vmem, size = 0x1000, scoped, tag = 'input window, operand 0, single buffered']
    #allocation4 [shape = 's32[1]{0}', space=sflag, size = 0x4, scoped, tag = 'scoped memory for lstm_forward.1']
    #allocation5 [shape = 'u8[4096]{0}', space=vmem, size = 0x1000, scoped, tag = 'input window, operand 1, single buffered']
    #allocation6 [shape = 's32[1]{0}', space=sflag, size = 0x4, scoped, tag = 'scoped memory for lstm_forward.1']
    #allocation7 [shape = 'u8[8192]{0}', space=vmem, size = 0x2000, scoped, tag = 'input window, operand 2, single buffered']
    %9 = vsyncpa [#allocation4], 0
    %10 = vsyncpa [#allocation6], 0
    // Predicated region
    $region2: #{lstm_forward.1} parent=1 // pred_check
      _
    $region3: #{lstm_forward.1} parent=1 // pred_check_branch
      %12 = sbr.rel (0) target = $region5
    $region4: #{lstm_forward.1} parent=1 // pred_region
      %s14 = ssub.s32 128, 128
      %15 = vsyncadd [#allocation4], %s14
      %s17 = sshll.u32 [#allocation3], 4
      %s18 = int_to_ptr.vmem [resolvable:$true] %s17
      %20 = dma.hbm_to_vmem [thread:$0]  %s0, 128, %s18, [#allocation4]
    $region5: #{lstm_forward.1} parent=1 // pred_fallthru
      _
    // Predicated region
    $region6: #{lstm_forward.1} parent=1 // pred_check
      _
    $region7: #{lstm_forward.1} parent=1 // pred_check_branch
      %22 = sbr.rel (0) target = $region9
    $region8: #{lstm_forward.1} parent=1 // pred_region
      %s24 = ssub.s32 128, 128
      %25 = vsyncadd [#allocation6], %s24
      %s27 = sshll.u32 [#allocation5], 4
      %s28 = int_to_ptr.vmem [resolvable:$true] %s27
      %30 = dma.hbm_to_vmem [thread:$0]  %s1, 128, %s28, [#allocation6]
    $region9: #{lstm_forward.1} parent=1 // pred_fallthru
      _
    // Predicated region
    $region10: #{lstm_forward.1} parent=1 // pred_check
      _
    $region11: #{lstm_forward.1} parent=1 // pred_check_branch
      %32 = sbr.rel (0) target = $region13
    $region12: #{lstm_forward.1} parent=1 // pred_region
      %s34 = ssub.s32 256, 256
      %35 = vsyncadd [#allocation6], %s34
      %s36 = sshll.u32 [#allocation7], 4
      %s37 = int_to_ptr.vmem [resolvable:$true] %s36
      %42 = dma.hbm_to_vmem [thread:$0]  %s2, 256, %s37, [#allocation6], 64, 64, 4
    $region13: #{lstm_forward.1} parent=1 // pred_fallthru
      _
    // Predicated region
    $region14: #{lstm_forward.1} parent=1 // pred_check
      _
    $region15: #{lstm_forward.1} parent=1 // pred_check_branch
      %44 = sbr.rel (0) target = $region17
    $region16: #{lstm_forward.1} parent=1 // pred_region
      _
    $region17: #{lstm_forward.1} parent=1 // pred_fallthru
      _
    // Predicated region
    $region18: #{lstm_forward.1} parent=1 // pred_check
      _
    $region19: #{lstm_forward.1} parent=1 // pred_check_branch
      %46 = sbr.rel (0) target = $region21
    $region20: #{lstm_forward.1} parent=1 // pred_region
      %47 = dma.done [#allocation4], 128
    $region21: #{lstm_forward.1} parent=1 // pred_fallthru
      _
    // Predicated region
    $region22: #{lstm_forward.1} parent=1 // pred_check
      _
    $region23: #{lstm_forward.1} parent=1 // pred_check_branch
      %49 = sbr.rel (0) target = $region25
    $region24: #{lstm_forward.1} parent=1 // pred_region
      %50 = dma.done [#allocation6], 128
    $region25: #{lstm_forward.1} parent=1 // pred_fallthru
      _
    // Predicated region
    $region26: #{lstm_forward.1} parent=1 // pred_check
      _
    $region27: #{lstm_forward.1} parent=1 // pred_check_branch
      %52 = sbr.rel (0) target = $region29
    $region28: #{lstm_forward.1} parent=1 // pred_region
      %53 = dma.done [#allocation6], 256
    $region29: #{lstm_forward.1} parent=1 // pred_fallthru
      _
    %v55 = vld [vmem:[#allocation3] sm:$0xff]
    %v56 = vld [vmem:[#allocation5] sm:$0x7f]
    %v57 = vld [vmem:[%s3] sm:$0x1]
    %v59 = vlaneseq
    %v60 = vshrl.u32 %v59, 7
    %v61 = vsub.s32 0, %v60
    %v62 = vrot.slane %v57, %v61
    %vm64 = vcmask 56320
    %v66 = vsel %vm64, %v55, 0
    %vm68 = vcmask 1046528
    %v70 = vsel %vm68, %v56, 0
    %72 = vmatprep.subr.mxu0 0.0
    %73 = vmatpush1.msra.mxu0 0.0
    %74 = vmatprep.subr.mxu0 0.0
    %75 = vmatpush1.msra.mxu0 0.0
    %76 = vmatprep.subr.mxu0 0.0
    %77 = vmatpush1.msra.mxu0 0.0
    %78 = vmatprep.subr.mxu0 0.0
    %79 = vmatpush1.msra.mxu0 0.0
    %80 = vmatprep.subr.mxu0 0.0
    %81 = vmatpush1.msra.mxu0 0.0
    %82 = vmatprep.subr.mxu0 0.0
    %83 = vmatpush1.msra.mxu0 0.0
    %84 = vmatprep.subr.mxu0 0.0
    %85 = vmatpush1.msra.mxu0 0.0
    %86 = vmatprep.subr.mxu0 0.0
    %87 = vmatpush1.msra.mxu0 0.0
    %88 = vmatprep.subr.mxu0 0.0
    %89 = vmatpush1.msra.mxu0 0.0
    %90 = vmatprep.subr.mxu0 0.0
    %91 = vmatpush1.msra.mxu0 0.0
    %92 = vmatprep.subr.mxu0 0.0
    %93 = vmatpush1.msra.mxu0 0.0
    %94 = vmatprep.subr.mxu0 0.0
    %95 = vmatpush1.msra.mxu0 0.0
    %96 = vmatprep.subr.mxu0 0.0
    %97 = vmatpush1.msra.mxu0 0.0
    %98 = vmatprep.subr.mxu0 0.0
    %99 = vmatpush1.msra.mxu0 0.0
    %100 = vmatprep.subr.mxu0 0.0
    %101 = vmatpush1.msra.mxu0 0.0
    %102 = vmatprep.subr.mxu0 0.0
    %103 = vmatpush1.msra.mxu0 %v70
    %104 = vmatprep.subr.mxu0 0.0
    %105 = vmatpush2.msra.mxu0 0.0
    %106 = vmatprep.subr.mxu0 0.0
    %107 = vmatpush2.msra.mxu0 0.0
    %108 = vmatprep.subr.mxu0 0.0
    %109 = vmatpush2.msra.mxu0 0.0
    %110 = vmatprep.subr.mxu0 0.0
    %111 = vmatpush2.msra.mxu0 0.0
    %112 = vmatprep.subr.mxu0 0.0
    %113 = vmatpush2.msra.mxu0 0.0
    %114 = vmatprep.subr.mxu0 0.0
    %115 = vmatpush2.msra.mxu0 0.0
    %116 = vmatprep.subr.mxu0 0.0
    %117 = vmatpush2.msra.mxu0 0.0
    %118 = vmatprep.subr.mxu0 0.0
    %119 = vmatpush2.msra.mxu0 0.0
    %120 = vmatprep.subr.mxu0 0.0
    %121 = vmatpush2.msra.mxu0 0.0
    %122 = vmatprep.subr.mxu0 0.0
    %123 = vmatpush2.msra.mxu0 0.0
    %124 = vmatprep.subr.mxu0 0.0
    %125 = vmatpush2.msra.mxu0 0.0
    %126 = vmatprep.subr.mxu0 0.0
    %127 = vmatpush2.msra.mxu0 0.0
    %128 = vmatprep.subr.mxu0 0.0
    %129 = vmatpush2.msra.mxu0 0.0
    %130 = vmatprep.subr.mxu0 0.0
    %131 = vmatpush2.msra.mxu0 0.0
    %132 = vmatprep.subr.mxu0 0.0
    %133 = vmatpush2.msra.mxu0 0.0
    %134 = vmatprep.subr.mxu0 0.0
    %135 = vmatpush2.msra.mxu0 0.0
    %136 = vmatprep.mubr.f32.mxu0 0.0
    %137 = vmatmul.mubr.f32.gmra.mxu0 %v66
    %v138 = vpop.f32.mrf.mxu0
    %v139 = vadd.f32 %v62, %v138
    %v140 = vpop.f32.mrf.mxu0
    %141 = vdwg.mxu0
    %142 = vst [vmem:[#allocation2] sm:$0xff] %v139
    %v143 = vld [vmem:[#allocation7] sm:$0xf]
    %v144 = vld [vmem:[#allocation7 + $0x4] sm:$0xf]
    %v145 = vld [vmem:[#allocation7 + $0x8] sm:$0xf]
    %v146 = vld [vmem:[#allocation7 + $0xc] sm:$0xf]
    %vm147 = vcmask 785408
    %v148 = vsel %vm147, 0.5, 1.0
    %v149 = vsel %vm147, 0.5, 0.0
    %v150 = vld [vmem:[#allocation2] sm:$0x1]
    %v155 = vunpack.c.l.b16 %v143
    %v156 = vunpack.c.l.b16 %v144
    %v157 = vunpack.c.l.b16 %v145
    %v158 = vunpack.c.l.b16 %v146
    %v159 = vpack.c.b16 %v156, %v155
    %v160 = vpack.c.b16 %v158, %v157
    %vm163 = vcmask 261120
    %v165 = vsel %vm163, 0, 0
    %167 = vmatprep.subr.bf16.mxu0 0
    %168 = vmatpush1.bf16.msra.mxu0 0
    %169 = vmatprep.subr.bf16.mxu0 0
    %170 = vmatpush1.bf16.msra.mxu0 0
    %171 = vmatprep.subr.bf16.mxu0 0
    %172 = vmatpush1.bf16.msra.mxu0 0
    %173 = vmatprep.subr.bf16.mxu0 0
    %174 = vmatpush1.bf16.msra.mxu0 0
    %175 = vmatprep.subr.bf16.mxu0 0
    %176 = vmatpush1.bf16.msra.mxu0 0
    %177 = vmatprep.subr.bf16.mxu0 0
    %178 = vmatpush1.bf16.msra.mxu0 0
    %179 = vmatprep.subr.bf16.mxu0 0
    %180 = vmatpush1.bf16.msra.mxu0 %v160
    %181 = vmatprep.subr.bf16.mxu0 0
    %182 = vmatpush1.bf16.msra.mxu0 %v159
    %183 = vmatprep.subr.bf16.mxu0 0
    %184 = vmatpush2.bf16.msra.mxu0 0
    %185 = vmatprep.subr.bf16.mxu0 0
    %186 = vmatpush2.bf16.msra.mxu0 0
    %187 = vmatprep.subr.bf16.mxu0 0
    %188 = vmatpush2.bf16.msra.mxu0 0
    %189 = vmatprep.subr.bf16.mxu0 0
    %190 = vmatpush2.bf16.msra.mxu0 0
    %191 = vmatprep.subr.bf16.mxu0 0
    %192 = vmatpush2.bf16.msra.mxu0 0
    %193 = vmatprep.subr.bf16.mxu0 0
    %194 = vmatpush2.bf16.msra.mxu0 0
    %195 = vmatprep.subr.bf16.mxu0 0
    %196 = vmatpush2.bf16.msra.mxu0 0
    %197 = vmatprep.subr.bf16.mxu0 0
    %198 = vmatpush2.bf16.msra.mxu0 0
    %199 = vmatprep.mubr.bf16.mxu0 0
    %200 = vmatmul.mubr.bf16.gmra.mxu0 %v165
    %v201 = vpop.f32.mrf.mxu0
    %v202 = vadd.f32 0.0, %v201
    %v203 = vpop.f32.mrf.mxu0
    %v204 = vpop.f32.mrf.mxu0
    %v205 = vpop.f32.mrf.mxu0
    %206 = vdwg.mxu0
    %v207 = vadd.f32 %v150, %v202
    %v208 = vmul.f32 %v207, %v148
    %v209 = vtanh.pop %v208
    %v210 = vmul.f32 %v209, %v148
    %v211 = vadd.f32 %v210, %v149
    %v212 = vmul.f32 %v211, 0.0
    %214 = vrot.lane.b32.xlu0 %v211, 32
    %v215 = vpop.permute.xlu0 %214
    %v217 = vmul.f32 %v211, %v215
    %219 = vrot.lane.b32.xlu0 %v217, 32
    %v220 = vpop.permute.xlu0 %219
    %v222 = vadd.f32 %v212, %v220
    %v223 = vtanh.pop %v222
    %225 = vrot.lane.b32.xlu0 %v223, 32
    %v226 = vpop.permute.xlu0 %225
    %v228 = vmul.f32 %v211, %v226
    %230 = vrot.lane.b32.xlu0 %v228, 64
    %v231 = vpop.permute.xlu0 %230
    %vm233 = vcmask 253952
    %234 = vst.msk [vmem:[%s4] sm:$0x1] %vm233, %v231
    %v235 = vld [vmem:[#allocation2 + $0x1] sm:$0x1]
    %v236 = vpack.c.bf16 %v228, %v228
    %238 = vrot.lane.b32.xlu0 %v236, 64
    %v239 = vpop.permute.xlu0 %238
    %v241 = vsel %vm163, %v239, 0
    %243 = vmatprep.subr.bf16.mxu0 0
    %244 = vmatpush1.bf16.msra.mxu0 0
    %245 = vmatprep.subr.bf16.mxu0 0
    %246 = vmatpush1.bf16.msra.mxu0 0
    %247 = vmatprep.subr.bf16.mxu0 0
    %248 = vmatpush1.bf16.msra.mxu0 0
    %249 = vmatprep.subr.bf16.mxu0 0
    %250 = vmatpush1.bf16.msra.mxu0 0
    %251 = vmatprep.subr.bf16.mxu0 0
    %252 = vmatpush1.bf16.msra.mxu0 0
    %253 = vmatprep.subr.bf16.mxu0 0
    %254 = vmatpush1.bf16.msra.mxu0 0
    %255 = vmatprep.subr.bf16.mxu0 0
    %256 = vmatpush1.bf16.msra.mxu0 %v160
    %257 = vmatprep.subr.bf16.mxu0 0
    %258 = vmatpush1.bf16.msra.mxu0 %v159
    %259 = vmatprep.subr.bf16.mxu0 0
    %260 = vmatpush2.bf16.msra.mxu0 0
    %261 = vmatprep.subr.bf16.mxu0 0
    %262 = vmatpush2.bf16.msra.mxu0 0
    %263 = vmatprep.subr.bf16.mxu0 0
    %264 = vmatpush2.bf16.msra.mxu0 0
    %265 = vmatprep.subr.bf16.mxu0 0
    %266 = vmatpush2.bf16.msra.mxu0 0
    %267 = vmatprep.subr.bf16.mxu0 0
    %268 = vmatpush2.bf16.msra.mxu0 0
    %269 = vmatprep.subr.bf16.mxu0 0
    %270 = vmatpush2.bf16.msra.mxu0 0
    %271 = vmatprep.subr.bf16.mxu0 0
    %272 = vmatpush2.bf16.msra.mxu0 0
    %273 = vmatprep.subr.bf16.mxu0 0
    %274 = vmatpush2.bf16.msra.mxu0 0
    %275 = vmatprep.mubr.bf16.mxu0 0
    %276 = vmatmul.mubr.bf16.gmra.mxu0 %v241
    %v277 = vpop.f32.mrf.mxu0
    %v278 = vadd.f32 0.0, %v277
    %v279 = vpop.f32.mrf.mxu0
    %v280 = vpop.f32.mrf.mxu0
    %v281 = vpop.f32.mrf.mxu0
    %282 = vdwg.mxu0
    %v283 = vadd.f32 %v235, %v278
    %v284 = vmul.f32 %v283, %v148
    %v285 = vtanh.pop %v284
    %v286 = vmul.f32 %v285, %v148
    %v287 = vadd.f32 %v286, %v149
    %v288 = vmul.f32 %v287, %v222
    %290 = vrot.lane.b32.xlu0 %v287, 32
    %v291 = vpop.permute.xlu0 %290
    %v293 = vmul.f32 %v287, %v291
    %295 = vrot.lane.b32.xlu0 %v293, 32
    %v296 = vpop.permute.xlu0 %295
    %v298 = vadd.f32 %v288, %v296
    %v299 = vtanh.pop %v298
    %301 = vrot.lane.b32.xlu0 %v299, 32
    %v302 = vpop.permute.xlu0 %301
    %v304 = vmul.f32 %v287, %v302
    %306 = vrot.lane.b32.xlu0 %v304, 64
    %v307 = vpop.permute.xlu0 %306
    %309 = vst.msk [vmem:[%s4 + $0x1] sm:$0x1] %vm233, %v307
    %v310 = vld [vmem:[#allocation2 + $0x2] sm:$0x1]
    %v311 = vpack.c.bf16 %v304, %v304
    %313 = vrot.lane.b32.xlu0 %v311, 64
    %v314 = vpop.permute.xlu0 %313
    %v316 = vsel %vm163, %v314, 0
    %318 = vmatprep.subr.bf16.mxu0 0
    %319 = vmatpush1.bf16.msra.mxu0 0
    %320 = vmatprep.subr.bf16.mxu0 0
    %321 = vmatpush1.bf16.msra.mxu0 0
    %322 = vmatprep.subr.bf16.mxu0 0
    %323 = vmatpush1.bf16.msra.mxu0 0
    %324 = vmatprep.subr.bf16.mxu0 0
    %325 = vmatpush1.bf16.msra.mxu0 0
    %326 = vmatprep.subr.bf16.mxu0 0
    %327 = vmatpush1.bf16.msra.mxu0 0
    %328 = vmatprep.subr.bf16.mxu0 0
    %329 = vmatpush1.bf16.msra.mxu0 0
    %330 = vmatprep.subr.bf16.mxu0 0
    %331 = vmatpush1.bf16.msra.mxu0 %v160
    %332 = vmatprep.subr.bf16.mxu0 0
    %333 = vmatpush1.bf16.msra.mxu0 %v159
    %334 = vmatprep.subr.bf16.mxu0 0
    %335 = vmatpush2.bf16.msra.mxu0 0
    %336 = vmatprep.subr.bf16.mxu0 0
    %337 = vmatpush2.bf16.msra.mxu0 0
    %338 = vmatprep.subr.bf16.mxu0 0
    %339 = vmatpush2.bf16.msra.mxu0 0
    %340 = vmatprep.subr.bf16.mxu0 0
    %341 = vmatpush2.bf16.msra.mxu0 0
    %342 = vmatprep.subr.bf16.mxu0 0
    %343 = vmatpush2.bf16.msra.mxu0 0
    %344 = vmatprep.subr.bf16.mxu0 0
    %345 = vmatpush2.bf16.msra.mxu0 0
    %346 = vmatprep.subr.bf16.mxu0 0
    %347 = vmatpush2.bf16.msra.mxu0 0
    %348 = vmatprep.subr.bf16.mxu0 0
    %349 = vmatpush2.bf16.msra.mxu0 0
    %350 = vmatprep.mubr.bf16.mxu0 0
    %351 = vmatmul.mubr.bf16.gmra.mxu0 %v316
    %v352 = vpop.f32.mrf.mxu0
    %v353 = vadd.f32 0.0, %v352
    %v354 = vpop.f32.mrf.mxu0
    %v355 = vpop.f32.mrf.mxu0
    %v356 = vpop.f32.mrf.mxu0
    %357 = vdwg.mxu0
    %v358 = vadd.f32 %v310, %v353
    %v359 = vmul.f32 %v358, %v148
    %v360 = vtanh.pop %v359
    %v361 = vmul.f32 %v360, %v148
    %v362 = vadd.f32 %v361, %v149
    %v363 = vmul.f32 %v362, %v298
    %365 = vrot.lane.b32.xlu0 %v362, 32
    %v366 = vpop.permute.xlu0 %365
    %v368 = vmul.f32 %v362, %v366
    %370 = vrot.lane.b32.xlu0 %v368, 32
    %v371 = vpop.permute.xlu0 %370
    %v373 = vadd.f32 %v363, %v371
    %v374 = vtanh.pop %v373
    %376 = vrot.lane.b32.xlu0 %v374, 32
    %v377 = vpop.permute.xlu0 %376
    %v379 = vmul.f32 %v362, %v377
    %381 = vrot.lane.b32.xlu0 %v379, 64
    %v382 = vpop.permute.xlu0 %381
    %384 = vst.msk [vmem:[%s4 + $0x2] sm:$0x1] %vm233, %v382
    %v385 = vld [vmem:[#allocation2 + $0x3] sm:$0x1]
    %v386 = vpack.c.bf16 %v379, %v379
    %388 = vrot.lane.b32.xlu0 %v386, 64
    %v389 = vpop.permute.xlu0 %388
    %v391 = vsel %vm163, %v389, 0
    %393 = vmatprep.subr.bf16.mxu0 0
    %394 = vmatpush1.bf16.msra.mxu0 0
    %395 = vmatprep.subr.bf16.mxu0 0
    %396 = vmatpush1.bf16.msra.mxu0 0
    %397 = vmatprep.subr.bf16.mxu0 0
    %398 = vmatpush1.bf16.msra.mxu0 0
    %399 = vmatprep.subr.bf16.mxu0 0
    %400 = vmatpush1.bf16.msra.mxu0 0
    %401 = vmatprep.subr.bf16.mxu0 0
    %402 = vmatpush1.bf16.msra.mxu0 0
    %403 = vmatprep.subr.bf16.mxu0 0
    %404 = vmatpush1.bf16.msra.mxu0 0
    %405 = vmatprep.subr.bf16.mxu0 0
    %406 = vmatpush1.bf16.msra.mxu0 %v160
    %407 = vmatprep.subr.bf16.mxu0 0
    %408 = vmatpush1.bf16.msra.mxu0 %v159
    %409 = vmatprep.subr.bf16.mxu0 0
    %410 = vmatpush2.bf16.msra.mxu0 0
    %411 = vmatprep.subr.bf16.mxu0 0
    %412 = vmatpush2.bf16.msra.mxu0 0
    %413 = vmatprep.subr.bf16.mxu0 0
    %414 = vmatpush2.bf16.msra.mxu0 0
    %415 = vmatprep.subr.bf16.mxu0 0
    %416 = vmatpush2.bf16.msra.mxu0 0
    %417 = vmatprep.subr.bf16.mxu0 0
    %418 = vmatpush2.bf16.msra.mxu0 0
    %419 = vmatprep.subr.bf16.mxu0 0
    %420 = vmatpush2.bf16.msra.mxu0 0
    %421 = vmatprep.subr.bf16.mxu0 0
    %422 = vmatpush2.bf16.msra.mxu0 0
    %423 = vmatprep.subr.bf16.mxu0 0
    %424 = vmatpush2.bf16.msra.mxu0 0
    %425 = vmatprep.mubr.bf16.mxu0 0
    %426 = vmatmul.mubr.bf16.gmra.mxu0 %v391
    %v427 = vpop.f32.mrf.mxu0
    %v428 = vadd.f32 0.0, %v427
    %v429 = vpop.f32.mrf.mxu0
    %v430 = vpop.f32.mrf.mxu0
    %v431 = vpop.f32.mrf.mxu0
    %432 = vdwg.mxu0
    %v433 = vadd.f32 %v385, %v428
    %v434 = vmul.f32 %v433, %v148
    %v435 = vtanh.pop %v434
    %v436 = vmul.f32 %v435, %v148
    %v437 = vadd.f32 %v436, %v149
    %v438 = vmul.f32 %v437, %v373
    %440 = vrot.lane.b32.xlu0 %v437, 32
    %v441 = vpop.permute.xlu0 %440
    %v443 = vmul.f32 %v437, %v441
    %445 = vrot.lane.b32.xlu0 %v443, 32
    %v446 = vpop.permute.xlu0 %445
    %v448 = vadd.f32 %v438, %v446
    %v449 = vtanh.pop %v448
    %451 = vrot.lane.b32.xlu0 %v449, 32
    %v452 = vpop.permute.xlu0 %451
    %v454 = vmul.f32 %v437, %v452
    %456 = vrot.lane.b32.xlu0 %v454, 64
    %v457 = vpop.permute.xlu0 %456
    %459 = vst.msk [vmem:[%s4 + $0x3] sm:$0x1] %vm233, %v457
    %v460 = vld [vmem:[#allocation2 + $0x4] sm:$0x1]
    %v461 = vpack.c.bf16 %v454, %v454
    %463 = vrot.lane.b32.xlu0 %v461, 64
    %v464 = vpop.permute.xlu0 %463
    %v466 = vsel %vm163, %v464, 0
    %468 = vmatprep.subr.bf16.mxu0 0
    %469 = vmatpush1.bf16.msra.mxu0 0
    %470 = vmatprep.subr.bf16.mxu0 0
    %471 = vmatpush1.bf16.msra.mxu0 0
    %472 = vmatprep.subr.bf16.mxu0 0
    %473 = vmatpush1.bf16.msra.mxu0 0
    %474 = vmatprep.subr.bf16.mxu0 0
    %475 = vmatpush1.bf16.msra.mxu0 0
    %476 = vmatprep.subr.bf16.mxu0 0
    %477 = vmatpush1.bf16.msra.mxu0 0
    %478 = vmatprep.subr.bf16.mxu0 0
    %479 = vmatpush1.bf16.msra.mxu0 0
    %480 = vmatprep.subr.bf16.mxu0 0
    %481 = vmatpush1.bf16.msra.mxu0 %v160
    %482 = vmatprep.subr.bf16.mxu0 0
    %483 = vmatpush1.bf16.msra.mxu0 %v159
    %484 = vmatprep.subr.bf16.mxu0 0
    %485 = vmatpush2.bf16.msra.mxu0 0
    %486 = vmatprep.subr.bf16.mxu0 0
    %487 = vmatpush2.bf16.msra.mxu0 0
    %488 = vmatprep.subr.bf16.mxu0 0
    %489 = vmatpush2.bf16.msra.mxu0 0
    %490 = vmatprep.subr.bf16.mxu0 0
    %491 = vmatpush2.bf16.msra.mxu0 0
    %492 = vmatprep.subr.bf16.mxu0 0
    %493 = vmatpush2.bf16.msra.mxu0 0
    %494 = vmatprep.subr.bf16.mxu0 0
    %495 = vmatpush2.bf16.msra.mxu0 0
    %496 = vmatprep.subr.bf16.mxu0 0
    %497 = vmatpush2.bf16.msra.mxu0 0
    %498 = vmatprep.subr.bf16.mxu0 0
    %499 = vmatpush2.bf16.msra.mxu0 0
    %500 = vmatprep.mubr.bf16.mxu0 0
    %501 = vmatmul.mubr.bf16.gmra.mxu0 %v466
    %v502 = vpop.f32.mrf.mxu0
    %v503 = vadd.f32 0.0, %v502
    %v504 = vpop.f32.mrf.mxu0
    %v505 = vpop.f32.mrf.mxu0
    %v506 = vpop.f32.mrf.mxu0
    %507 = vdwg.mxu0
    %v508 = vadd.f32 %v460, %v503
    %v509 = vmul.f32 %v508, %v148
    %v510 = vtanh.pop %v509
    %v511 = vmul.f32 %v510, %v148
    %v512 = vadd.f32 %v511, %v149
    %v513 = vmul.f32 %v512, %v448
    %515 = vrot.lane.b32.xlu0 %v512, 32
    %v516 = vpop.permute.xlu0 %515
    %v518 = vmul.f32 %v512, %v516
    %520 = vrot.lane.b32.xlu0 %v518, 32
    %v521 = vpop.permute.xlu0 %520
    %v523 = vadd.f32 %v513, %v521
    %v524 = vtanh.pop %v523
    %526 = vrot.lane.b32.xlu0 %v524, 32
    %v527 = vpop.permute.xlu0 %526
    %v529 = vmul.f32 %v512, %v527
    %531 = vrot.lane.b32.xlu0 %v529, 64
    %v532 = vpop.permute.xlu0 %531
    %534 = vst.msk [vmem:[%s4 + $0x4] sm:$0x1] %vm233, %v532
    %v535 = vld [vmem:[#allocation2 + $0x5] sm:$0x1]
    %v536 = vpack.c.bf16 %v529, %v529
    %538 = vrot.lane.b32.xlu0 %v536, 64
    %v539 = vpop.permute.xlu0 %538
    %v541 = vsel %vm163, %v539, 0
    %543 = vmatprep.subr.bf16.mxu0 0
    %544 = vmatpush1.bf16.msra.mxu0 0
    %545 = vmatprep.subr.bf16.mxu0 0
    %546 = vmatpush1.bf16.msra.mxu0 0
    %547 = vmatprep.subr.bf16.mxu0 0
    %548 = vmatpush1.bf16.msra.mxu0 0
    %549 = vmatprep.subr.bf16.mxu0 0
    %550 = vmatpush1.bf16.msra.mxu0 0
    %551 = vmatprep.subr.bf16.mxu0 0
    %552 = vmatpush1.bf16.msra.mxu0 0
    %553 = vmatprep.subr.bf16.mxu0 0
    %554 = vmatpush1.bf16.msra.mxu0 0
    %555 = vmatprep.subr.bf16.mxu0 0
    %556 = vmatpush1.bf16.msra.mxu0 %v160
    %557 = vmatprep.subr.bf16.mxu0 0
    %558 = vmatpush1.bf16.msra.mxu0 %v159
    %559 = vmatprep.subr.bf16.mxu0 0
    %560 = vmatpush2.bf16.msra.mxu0 0
    %561 = vmatprep.subr.bf16.mxu0 0
    %562 = vmatpush2.bf16.msra.mxu0 0
    %563 = vmatprep.subr.bf16.mxu0 0
    %564 = vmatpush2.bf16.msra.mxu0 0
    %565 = vmatprep.subr.bf16.mxu0 0
    %566 = vmatpush2.bf16.msra.mxu0 0
    %567 = vmatprep.subr.bf16.mxu0 0
    %568 = vmatpush2.bf16.msra.mxu0 0
    %569 = vmatprep.subr.bf16.mxu0 0
    %570 = vmatpush2.bf16.msra.mxu0 0
    %571 = vmatprep.subr.bf16.mxu0 0
    %572 = vmatpush2.bf16.msra.mxu0 0
    %573 = vmatprep.subr.bf16.mxu0 0
    %574 = vmatpush2.bf16.msra.mxu0 0
    %575 = vmatprep.mubr.bf16.mxu0 0
    %576 = vmatmul.mubr.bf16.gmra.mxu0 %v541
    %v577 = vpop.f32.mrf.mxu0
    %v578 = vadd.f32 0.0, %v577
    %v579 = vpop.f32.mrf.mxu0
    %v580 = vpop.f32.mrf.mxu0
    %v581 = vpop.f32.mrf.mxu0
    %582 = vdwg.mxu0
    %v583 = vadd.f32 %v535, %v578
    %v584 = vmul.f32 %v583, %v148
    %v585 = vtanh.pop %v584
    %v586 = vmul.f32 %v585, %v148
    %v587 = vadd.f32 %v586, %v149
    %v588 = vmul.f32 %v587, %v523
    %590 = vrot.lane.b32.xlu0 %v587, 32
    %v591 = vpop.permute.xlu0 %590
    %v593 = vmul.f32 %v587, %v591
    %595 = vrot.lane.b32.xlu0 %v593, 32
    %v596 = vpop.permute.xlu0 %595
    %v598 = vadd.f32 %v588, %v596
    %v599 = vtanh.pop %v598
    %601 = vrot.lane.b32.xlu0 %v599, 32
    %v602 = vpop.permute.xlu0 %601
    %v604 = vmul.f32 %v587, %v602
    %606 = vrot.lane.b32.xlu0 %v604, 64
    %v607 = vpop.permute.xlu0 %606
    %609 = vst.msk [vmem:[%s4 + $0x5] sm:$0x1] %vm233, %v607
    %v610 = vld [vmem:[#allocation2 + $0x6] sm:$0x1]
    %v611 = vpack.c.bf16 %v604, %v604
    %613 = vrot.lane.b32.xlu0 %v611, 64
    %v614 = vpop.permute.xlu0 %613
    %v616 = vsel %vm163, %v614, 0
    %618 = vmatprep.subr.bf16.mxu0 0
    %619 = vmatpush1.bf16.msra.mxu0 0
    %620 = vmatprep.subr.bf16.mxu0 0
    %621 = vmatpush1.bf16.msra.mxu0 0
    %622 = vmatprep.subr.bf16.mxu0 0
    %623 = vmatpush1.bf16.msra.mxu0 0
    %624 = vmatprep.subr.bf16.mxu0 0
    %625 = vmatpush1.bf16.msra.mxu0 0
    %626 = vmatprep.subr.bf16.mxu0 0
    %627 = vmatpush1.bf16.msra.mxu0 0
    %628 = vmatprep.subr.bf16.mxu0 0
    %629 = vmatpush1.bf16.msra.mxu0 0
    %630 = vmatprep.subr.bf16.mxu0 0
    %631 = vmatpush1.bf16.msra.mxu0 %v160
    %632 = vmatprep.subr.bf16.mxu0 0
    %633 = vmatpush1.bf16.msra.mxu0 %v159
    %634 = vmatprep.subr.bf16.mxu0 0
    %635 = vmatpush2.bf16.msra.mxu0 0
    %636 = vmatprep.subr.bf16.mxu0 0
    %637 = vmatpush2.bf16.msra.mxu0 0
    %638 = vmatprep.subr.bf16.mxu0 0
    %639 = vmatpush2.bf16.msra.mxu0 0
    %640 = vmatprep.subr.bf16.mxu0 0
    %641 = vmatpush2.bf16.msra.mxu0 0
    %642 = vmatprep.subr.bf16.mxu0 0
    %643 = vmatpush2.bf16.msra.mxu0 0
    %644 = vmatprep.subr.bf16.mxu0 0
    %645 = vmatpush2.bf16.msra.mxu0 0
    %646 = vmatprep.subr.bf16.mxu0 0
    %647 = vmatpush2.bf16.msra.mxu0 0
    %648 = vmatprep.subr.bf16.mxu0 0
    %649 = vmatpush2.bf16.msra.mxu0 0
    %650 = vmatprep.mubr.bf16.mxu0 0
    %651 = vmatmul.mubr.bf16.gmra.mxu0 %v616
    %v652 = vpop.f32.mrf.mxu0
    %v653 = vadd.f32 0.0, %v652
    %v654 = vpop.f32.mrf.mxu0
    %v655 = vpop.f32.mrf.mxu0
    %v656 = vpop.f32.mrf.mxu0
    %657 = vdwg.mxu0
    %v658 = vadd.f32 %v610, %v653
    %v659 = vmul.f32 %v658, %v148
    %v660 = vtanh.pop %v659
    %v661 = vmul.f32 %v660, %v148
    %v662 = vadd.f32 %v661, %v149
    %v663 = vmul.f32 %v662, %v598
    %665 = vrot.lane.b32.xlu0 %v662, 32
    %v666 = vpop.permute.xlu0 %665
    %v668 = vmul.f32 %v662, %v666
    %670 = vrot.lane.b32.xlu0 %v668, 32
    %v671 = vpop.permute.xlu0 %670
    %v673 = vadd.f32 %v663, %v671
    %v674 = vtanh.pop %v673
    %676 = vrot.lane.b32.xlu0 %v674, 32
    %v677 = vpop.permute.xlu0 %676
    %v679 = vmul.f32 %v662, %v677
    %681 = vrot.lane.b32.xlu0 %v679, 64
    %v682 = vpop.permute.xlu0 %681
    %684 = vst.msk [vmem:[%s4 + $0x6] sm:$0x1] %vm233, %v682
    %v685 = vld [vmem:[#allocation2 + $0x7] sm:$0x1]
    %v686 = vpack.c.bf16 %v679, %v679
    %688 = vrot.lane.b32.xlu0 %v686, 64
    %v689 = vpop.permute.xlu0 %688
    %v691 = vsel %vm163, %v689, 0
    %693 = vmatprep.subr.bf16.mxu0 0
    %694 = vmatpush1.bf16.msra.mxu0 0
    %695 = vmatprep.subr.bf16.mxu0 0
    %696 = vmatpush1.bf16.msra.mxu0 0
    %697 = vmatprep.subr.bf16.mxu0 0
    %698 = vmatpush1.bf16.msra.mxu0 0
    %699 = vmatprep.subr.bf16.mxu0 0
    %700 = vmatpush1.bf16.msra.mxu0 0
    %701 = vmatprep.subr.bf16.mxu0 0
    %702 = vmatpush1.bf16.msra.mxu0 0
    %703 = vmatprep.subr.bf16.mxu0 0
    %704 = vmatpush1.bf16.msra.mxu0 0
    %705 = vmatprep.subr.bf16.mxu0 0
    %706 = vmatpush1.bf16.msra.mxu0 %v160
    %707 = vmatprep.subr.bf16.mxu0 0
    %708 = vmatpush1.bf16.msra.mxu0 %v159
    %709 = vmatprep.subr.bf16.mxu0 0
    %710 = vmatpush2.bf16.msra.mxu0 0
    %711 = vmatprep.subr.bf16.mxu0 0
    %712 = vmatpush2.bf16.msra.mxu0 0
    %713 = vmatprep.subr.bf16.mxu0 0
    %714 = vmatpush2.bf16.msra.mxu0 0
    %715 = vmatprep.subr.bf16.mxu0 0
    %716 = vmatpush2.bf16.msra.mxu0 0
    %717 = vmatprep.subr.bf16.mxu0 0
    %718 = vmatpush2.bf16.msra.mxu0 0
    %719 = vmatprep.subr.bf16.mxu0 0
    %720 = vmatpush2.bf16.msra.mxu0 0
    %721 = vmatprep.subr.bf16.mxu0 0
    %722 = vmatpush2.bf16.msra.mxu0 0
    %723 = vmatprep.subr.bf16.mxu0 0
    %724 = vmatpush2.bf16.msra.mxu0 0
    %725 = vmatprep.mubr.bf16.mxu0 0
    %726 = vmatmul.mubr.bf16.gmra.mxu0 %v691
    %v727 = vpop.f32.mrf.mxu0
    %v728 = vadd.f32 0.0, %v727
    %v729 = vpop.f32.mrf.mxu0
    %v730 = vpop.f32.mrf.mxu0
    %v731 = vpop.f32.mrf.mxu0
    %732 = vdwg.mxu0
    %v733 = vadd.f32 %v685, %v728
    %v734 = vmul.f32 %v733, %v148
    %v735 = vtanh.pop %v734
    %v736 = vmul.f32 %v735, %v148
    %v737 = vadd.f32 %v736, %v149
    %v738 = vmul.f32 %v737, %v673
    %740 = vrot.lane.b32.xlu0 %v737, 32
    %v741 = vpop.permute.xlu0 %740
    %v743 = vmul.f32 %v737, %v741
    %745 = vrot.lane.b32.xlu0 %v743, 32
    %v746 = vpop.permute.xlu0 %745
    %v748 = vadd.f32 %v738, %v746
    %v749 = vtanh.pop %v748
    %751 = vrot.lane.b32.xlu0 %v749, 32
    %v752 = vpop.permute.xlu0 %751
    %v754 = vmul.f32 %v737, %v752
    %756 = vrot.lane.b32.xlu0 %v754, 64
    %v757 = vpop.permute.xlu0 %756
    %759 = vst.msk [vmem:[%s4 + $0x7] sm:$0x1] %vm233, %v757
    // Predicated region
    $region30: #{lstm_forward.1} parent=1 // pred_check
      _
    $region31: #{lstm_forward.1} parent=1 // pred_check_branch
      %761 = sbr.rel (0) target = $region33
    $region32: #{lstm_forward.1} parent=1 // pred_region
      _
    $region33: #{lstm_forward.1} parent=1 // pred_fallthru
      _
    // Predicated region
    $region34: #{lstm_forward.1} parent=1 // pred_check
      _
    $region35: #{lstm_forward.1} parent=1 // pred_check_branch
      %763 = sbr.rel (0) target = $region37
    $region36: #{lstm_forward.1} parent=1 // pred_region
      _
    $region37: #{lstm_forward.1} parent=1 // pred_fallthru
      _
    %764 = vsyncpa [#allocation4], 1
    %765 = vsyncpa [#allocation6], 1

</llo_original>
